<compile_context>
chip_gen: v7x
topology: tpu7x:2x2x1
jax: 0.10.0
libtpu: 0.0.40
codegen_flags: <defaults>
</compile_context>

<pallas_src>
import functools

import jax
import jax.numpy as jnp
from jax.experimental import pallas as pl
from jax.experimental.pallas import tpu as pltpu


def _deconv_kernel(w_ref, b_ref, x_ref, o_ref, *, negative_slope: float):
    # w_ref: (Cout*4, Cin)  b_ref: (Cout*4, 1)  x_ref: (Cin, tile)  o_ref: (Cout*4, tile)
    acc = jnp.dot(
        w_ref[...], x_ref[...],
        preferred_element_type=jnp.float32,
        precision=jax.lax.Precision.HIGHEST,  # exact f32 accumulation; MXU has >99% slack here
    )
    acc = acc + b_ref[...]                     # bias broadcast along the lane (pixel) axis
    # LeakyReLU (PyTorch default negative_slope = 0.01); slope 0.0 == plain ReLU.
    o_ref[...] = jnp.where(acc >= 0, acc, negative_slope * acc).astype(o_ref.dtype)


def _pick_tile_hw(hw: int, cap: int) -> int:
    """Lane tile over one image plane: the whole plane if it fits the cap, else the largest
    multiple-of-128 divisor of hw <= cap, else cap itself (Pallas masks the ragged tail)."""
    if hw <= cap:
        return hw
    d = (cap // 128) * 128
    while d >= 128:
        if hw % d == 0:
            return d
        d -= 128
    return (cap // 128) * 128


def conv_transpose_2x2_lrelu(x, weight, bias, *, tile_hw=32768, negative_slope=0.01,
                             out_dtype=None, grouped_output=False):
    """x: (N, Cin, H, W) NCHW.  weight: (Cin, Cout, 2, 2) (PyTorch ConvTranspose2d layout).
    bias: (Cout,).  Returns (N, Cout, 2H, 2W) NCHW with LeakyReLU applied
    (or (N, Cout, 2, 2, H, W) if grouped_output=True)."""
    N, Cin, H, W = x.shape
    Cin_w, Cout, kh, kw = weight.shape
    assert Cin == Cin_w and kh == 2 and kw == 2

    HW = H * W
    Kp = Cout * 4
    out_dtype = x.dtype if out_dtype is None else out_dtype
    itm = jnp.dtype(x.dtype).itemsize
    oitm = jnp.dtype(out_dtype).itemsize

    # ---- tile selection, bounded by a VMEM budget (double-buffered blocks + f32 temps) ----
    vmem_budget = 36 * 1024 * 1024
    per_lane_bytes = 2 * Cin * itm + 2 * Kp * oitm + 3 * Kp * 4
    max_tile = max(128, (vmem_budget // per_lane_bytes) // 128 * 128)
    cap = (max(128, min(int(tile_hw), max_tile)) // 128) * 128
    tile = _pick_tile_hw(HW, cap)
    hw_blocks = pl.cdiv(HW, tile)

    in_blk = Cin * tile * itm
    out_blk = Kp * tile * oitm
    vmem_need = 2 * (in_blk + out_blk) + 3 * Kp * tile * 4 + (2 << 20)
    vmem_limit = int(min(max(vmem_need, 32 << 20), 56 << 20))

    # ---- operands (no data movement for x: reshape is free) -------------------------------
    x3 = x.reshape(N, Cin, HW)
    # W^T[(co*2+kh)*2+kw, ci] = weight[ci, co, kh, kw]
    w_t = jnp.transpose(weight, (1, 2, 3, 0)).reshape(Kp, Cin).astype(x.dtype)
    # bias as a column (one value per (co, kh, kw) row), broadcast along the pixel lanes
    b_col = jnp.repeat(bias, 4).reshape(Kp, 1).astype(jnp.float32)

    flops = 2 * N * HW * Cin * Kp + 4 * N * HW * Kp
    bytes_accessed = itm * (Cin * N * HW + Kp * Cin) + 4 * Kp + oitm * Kp * N * HW

    kernel = functools.partial(_deconv_kernel, negative_slope=float(negative_slope))

    y3 = pl.pallas_call(
        kernel,
        out_shape=jax.ShapeDtypeStruct((N, Kp, HW), out_dtype),
        grid_spec=pltpu.PrefetchScalarGridSpec(
            num_scalar_prefetch=0,
            grid=(N, hw_blocks),
            in_specs=[
                pl.BlockSpec((Kp, Cin), lambda n, i: (0, 0)),        # weight, resident
                pl.BlockSpec((Kp, 1), lambda n, i: (0, 0)),          # bias, resident
                pl.BlockSpec((None, Cin, tile), lambda n, i: (n, 0, i)),  # pixels, lane-dense
            ],
            out_specs=pl.BlockSpec((None, Kp, tile), lambda n, i: (n, 0, i)),
        ),
        compiler_params=pltpu.CompilerParams(
            dimension_semantics=("parallel", "parallel"),
            vmem_limit_bytes=vmem_limit),
        cost_estimate=pl.CostEstimate(
            flops=flops, transcendentals=0, bytes_accessed=bytes_accessed),
    )(w_t, b_col, x3)

    # ---- back to NCHW ----------------------------------------------------------------------
    y = y3.reshape(N, Cout, 2, 2, H, W)          # (n, co, kh, kw, h, w) -- free reshape
    if grouped_output:
        return y                                  # skip the de-interleave for layout-aware consumers
    y = jnp.transpose(y, (0, 1, 4, 2, 5, 3)).reshape(N, Cout, 2 * H, 2 * W)
    return y


def _reference(x, weight, bias, negative_slope=0.01):
    # Pure-JAX reference for the non-overlapping 2x2 transposed conv + LeakyReLU.
    y = jnp.einsum("nihw,iokl->nohkwl", x, weight,
                   precision=jax.lax.Precision.HIGHEST)
    N, Cout, H, _, W, _ = y.shape
    y = y.reshape(N, Cout, 2 * H, 2 * W)
    y = y + bias.reshape(1, -1, 1, 1)
    return jnp.where(y >= 0, y, negative_slope * y)


if __name__ == "__main__":
    key = jax.random.PRNGKey(0)

    cases = [
        # (N, Cin, Cout, H, W, tile_hw_cap)
        (2, 4, 8, 16, 16, 32768),  # module-scale default: one pixel block per image
        (2, 4, 8, 16, 16, 128),    # multi-block pixel axis: HW=256 -> 2 blocks per image
        (1, 4, 8, 32, 32, 384),    # divisor-search path: HW=1024 -> tile 256, 4 blocks
        (1, 3, 6, 10, 12, 32768),  # HW=120 not a multiple of 128 -> full-plane block path
    ]

    for (N, Cin, Cout, H, W, cap) in cases:
        k1, k2, k3, key = jax.random.split(key, 4)
        x = jax.random.normal(k1, (N, Cin, H, W), dtype=jnp.float32)
        # PyTorch ConvTranspose2d weight shape: (in_channels, out_channels, kH, kW)
        weight = jax.random.normal(k2, (Cin, Cout, 2, 2), dtype=jnp.float32) * 0.1
        bias = jax.random.normal(k3, (Cout,), dtype=jnp.float32) * 0.1

        y = conv_transpose_2x2_lrelu(x, weight, bias, tile_hw=cap)
        jax.block_until_ready(y)

        y_ref = _reference(x, weight, bias)
        assert y.shape == (N, Cout, 2 * H, 2 * W), (y.shape, (N, Cout, 2 * H, 2 * W))
        assert jnp.allclose(y, y_ref, atol=1e-4, rtol=1e-4), \
            f"mismatch for case N={N} Cin={Cin} Cout={Cout} H={H} W={W} cap={cap}"

    print("KERNEL_OK")
</pallas_src>

<mosaic_0001>
module attributes {stable_mosaic.version = 11 : i64} {
  func.func @_deconv_kernel(%arg0: i32, %arg1: i32, %arg2: memref<32x4xf32, #tpu.memory_space<vmem>>, %arg3: memref<32x1xf32, #tpu.memory_space<vmem>>, %arg4: memref<1x4x256xf32, #tpu.memory_space<vmem>>, %arg5: memref<1x32x256xf32, #tpu.memory_space<vmem>>) attributes {dimension_semantics = [#tpu.dimension_semantics<parallel>, #tpu.dimension_semantics<parallel>], iteration_bounds = array<i64: 2, 1>, scalar_prefetch = 0 : i64, scratch_operands = 0 : i64, tpu.core_type = #tpu.core_type<tc>, window_params = [{pipeline_mode = #tpu.pipeline_mode<synchronous>, transform_indices = @transform_0, window_bounds = array<i64: 32, 4>}, {pipeline_mode = #tpu.pipeline_mode<synchronous>, transform_indices = @transform_1, window_bounds = array<i64: 32, 1>}, {transform_indices = @transform_2, window_bounds = array<i64: 1, 4, 256>}, {transform_indices = @transform_3, window_bounds = array<i64: 1, 32, 256>}]} {
    %c0 = arith.constant 0 : index
    %c0_0 = arith.constant 0 : index
    %0 = vector.load %arg2[%c0, %c0_0] : memref<32x4xf32, #tpu.memory_space<vmem>>, vector<32x4xf32>
    %c0_1 = arith.constant 0 : index
    %c0_2 = arith.constant 0 : index
    %c0_3 = arith.constant 0 : index
    %1 = vector.load %arg4[%c0_1, %c0_2, %c0_3] : memref<1x4x256xf32, #tpu.memory_space<vmem>>, vector<1x4x256xf32>
    %2 = vector.shape_cast %1 : vector<1x4x256xf32> to vector<4x256xf32>
    %cst = arith.constant dense<0.000000e+00> : vector<32x256xf32>
    %3 = tpu.matmul %0, %2, %cst {dimension_numbers = #tpu.dot_dimension_numbers<[1], [0], [0], [1], [0, 0, 1, 1], [], []>, precision = #tpu.contract_precision<fp32>} : vector<32x4xf32>, vector<4x256xf32>, vector<32x256xf32> -> vector<32x256xf32>
    %c0_4 = arith.constant 0 : index
    %c0_5 = arith.constant 0 : index
    %4 = vector.load %arg3[%c0_4, %c0_5] : memref<32x1xf32, #tpu.memory_space<vmem>>, vector<32x1xf32>
    %5 = vector.broadcast %4 : vector<32x1xf32> to vector<32x256xf32>
    %6 = arith.addf %3, %5 : vector<32x256xf32>
    %cst_6 = arith.constant 0.000000e+00 : f32
    %7 = vector.broadcast %cst_6 : f32 to vector<32x256xf32>
    %8 = arith.cmpf oge, %6, %7 : vector<32x256xf32>
    %cst_7 = arith.constant 0.00999999977 : f32
    %9 = vector.broadcast %cst_7 : f32 to vector<32x256xf32>
    %10 = arith.mulf %9, %6 : vector<32x256xf32>
    %11 = arith.select %8, %6, %10 : vector<32x256xi1>, vector<32x256xf32>
    %c0_8 = arith.constant 0 : index
    %c0_9 = arith.constant 0 : index
    %c0_10 = arith.constant 0 : index
    %12 = vector.load %arg5[%c0_8, %c0_9, %c0_10] : memref<1x32x256xf32, #tpu.memory_space<vmem>>, vector<1x32x256xf32>
    %13 = vector.shape_cast %12 : vector<1x32x256xf32> to vector<32x256xf32>
    %14 = vector.shape_cast %11 : vector<32x256xf32> to vector<1x32x256xf32>
    tpu.vector_store %arg5[%c0_8, %c0_9, %c0_10], %14 {strides = array<i32>} : memref<1x32x256xf32, #tpu.memory_space<vmem>>, vector<1x32x256xf32>,
    return
  }
  func.func @transform_0(%arg0: i32, %arg1: i32) -> (i32, i32) {
    %c0_i32 = arith.constant 0 : i32
    %c0_i32_0 = arith.constant 0 : i32
    %c0_i32_1 = arith.constant 0 : i32
    return %c0_i32, %c0_i32_0 : i32, i32
  }
  func.func @transform_1(%arg0: i32, %arg1: i32) -> (i32, i32) {
    %c0_i32 = arith.constant 0 : i32
    %c0_i32_0 = arith.constant 0 : i32
    %c0_i32_1 = arith.constant 0 : i32
    return %c0_i32, %c0_i32_0 : i32, i32
  }
  func.func @transform_2(%arg0: i32, %arg1: i32) -> (i32, i32, i32) {
    %c0_i32 = arith.constant 0 : i32
    %c0_i32_0 = arith.constant 0 : i32
    return %arg0, %c0_i32, %arg1 : i32, i32, i32
  }
  func.func @transform_3(%arg0: i32, %arg1: i32) -> (i32, i32, i32) {
    %c0_i32 = arith.constant 0 : i32
    %c0_i32_0 = arith.constant 0 : i32
    return %arg0, %c0_i32, %arg1 : i32, i32, i32
  }
}

</mosaic_0001>

<llo_original>
// kernel: tpu_custom_call.1
$region0: #{tpu_custom_call.1}
  #allocation0 [shape = 'u32[]', space=smem, size = 0x4, offset = 0x4, fixed_abs, tag = 'smem constant byte address 0x4 - core index']
  #allocation1 [shape = 'u32[144,128]{1,0:T(1,128)}', space=vmem, size = 0x12000, scoped, tag = 'internal scratch']
  %s0 = inlined_call_operand.vmem [shape: f32[32,4], index: 0, kind: input, shape index: {}]
  %s1 = inlined_call_operand.vmem [shape: f32[32,1], index: 1, kind: input, shape index: {}]
  %s2 = inlined_call_operand.vmem [shape: f32[2,4,256], index: 2, kind: input, shape index: {}]
  %s3 = inlined_call_operand.hbm [shape: f32[2,32,256], index: 3, kind: output, shape index: {}]
  %s4 = sld [smem:[#allocation0]]
  $region45: #{tpu_custom_call.1} parent=0
    _
  %s6 = ssub.s32 1, %s4
  %s7 = scalar_select 0, %s6, %s4
  $region1: #{tpu_custom_call.1} parent=0
    #allocation2 [shape = 'u8[65536]{0}', space=vmem, size = 0x10000, scoped, tag = 'output window, operand 0']
    #allocation3 [shape = 's32[2]{0}', space=sflag, size = 0x8, scoped, tag = 'scoped memory for tpu_custom_call.1']
    %8 = vsyncpa [#allocation3], 0
    %s9 = scalar_lea.sflag [#allocation3], 1
    %10 = vsyncpa %s9, 0
    loop: start=0, step=1, limit=4
    $region2: #{tpu_custom_call.1} parent=1 // loop_pre_header
      _
    $region3: #{tpu_custom_call.1} parent=1 // loop_header
      %s12 = sphi 0, %s16
      %p13 = scmp.ge.s32.totalorder %s12, 4
      %s19 = sphi 0, %s31
      %s20 = sphi 0, %s27
      %s21 = sphi 0, %s19
      %s22 = sphi 0, %s20
      %s23 = sphi 0, %s21
      %s24 = sphi 0, %s22
      %s32 = sphi 0, %s32
      %s34 = sphi 0, %s32
      %s35 = sphi 0, %s34
      %s49 = sphi 0, %s35
      %s53 = sphi 0, %s53
      %s55 = sphi 0, %s53
      %s56 = sphi 0, %s55
      %s70 = sphi 0, %s56
      %s78 = sphi 0, %s80
      %s81 = sphi 0, %s78
      %s82 = sphi 0, %s81
      %s98 = sphi 0, %s82
      %s106 = sphi 0, %s108
      %s109 = sphi 0, %s106
      %s110 = sphi 0, %s109
      %s126 = sphi 0, %s110
    $region4: #{tpu_custom_call.1} parent=1 // loop_header_branch
      %15 = sbr.rel (%p13) target = $region8
    $region5: #{tpu_custom_call.1} parent=1 // loop_body
      %s17 = ssub.s32 %s12, 1
      %s18 = ssub.s32 %s12, 2
      %s25 = sadd.s32 1, %s20
      %p26 = scmp.ge.s32.totalorder %s25, 1
      %s27 = scalar_select %p26, 0, %s25
      %s28 = sadd.s32 1, %s19
      %s29 = scalar_select %p26, %s28, %s19
      %p30 = scmp.ge.s32.totalorder %s29, 2
      %s31 = scalar_select %p30, 0, %s29
      %s33 = sadd.s32 %s32, 1
      %p36 = scmp.eq.s32.totalorder %s12, 1
      %p37 = scmp.ne.s32.totalorder %s32, %s34
      %p38 = scmp.eq.s32.totalorder %s12, 0
      %p39 = por %p37, %p38
      %p40 = scmp.ne.s32.totalorder %s32, %s34
      %p41 = scmp.eq.s32.totalorder %s17, 1
      %p42 = por %p40, %p41
      %p43 = scmp.ne.s32.totalorder %s34, %s35
      %p44 = scmp.eq.s32.totalorder %s17, 0
      %p45 = por %p43, %p44
      %p46 = scmp.ne.s32.totalorder %s34, %s35
      %p47 = scmp.eq.s32.totalorder %s18, 1
      %p48 = por %p46, %p47
      %p50 = scmp.ne.s32.totalorder %s35, %s49
      %p51 = scmp.eq.s32.totalorder %s18, 0
      %p52 = por %p50, %p51
      %s54 = sadd.s32 %s53, 1
      %p57 = scmp.eq.s32.totalorder %s12, 1
      %p58 = scmp.ne.s32.totalorder %s53, %s55
      %p59 = scmp.eq.s32.totalorder %s12, 0
      %p60 = por %p58, %p59
      %p61 = scmp.ne.s32.totalorder %s53, %s55
      %p62 = scmp.eq.s32.totalorder %s17, 1
      %p63 = por %p61, %p62
      %p64 = scmp.ne.s32.totalorder %s55, %s56
      %p65 = scmp.eq.s32.totalorder %s17, 0
      %p66 = por %p64, %p65
      %p67 = scmp.ne.s32.totalorder %s55, %s56
      %p68 = scmp.eq.s32.totalorder %s18, 1
      %p69 = por %p67, %p68
      %p71 = scmp.ne.s32.totalorder %s56, %s70
      %p72 = scmp.eq.s32.totalorder %s18, 0
      %p73 = por %p71, %p72
      %s74 = ssub.s32 %s19, %s31
      %s75 = ssub.s32 %s20, %s27
      %s76 = sor.u32 %s74, %s75
      %p77 = scmp.eq.s32.totalorder %s76, 0
      %s79 = sadd.s32 %s78, 1
      %s80 = scalar_select %p77, %s78, %s79
      %p83 = pneg %p77
      %p84 = scmp.eq.s32.totalorder %s12, 1
      %p85 = por %p83, %p84
      %p86 = scmp.ne.s32.totalorder %s78, %s81
      %p87 = scmp.eq.s32.totalorder %s12, 0
      %p88 = por %p86, %p87
      %p89 = scmp.ne.s32.totalorder %s78, %s81
      %p90 = scmp.eq.s32.totalorder %s17, 1
      %p91 = por %p89, %p90
      %p92 = scmp.ne.s32.totalorder %s81, %s82
      %p93 = scmp.eq.s32.totalorder %s17, 0
      %p94 = por %p92, %p93
      %p95 = scmp.ne.s32.totalorder %s81, %s82
      %p96 = scmp.eq.s32.totalorder %s18, 1
      %p97 = por %p95, %p96
      %p99 = scmp.ne.s32.totalorder %s82, %s98
      %p100 = scmp.eq.s32.totalorder %s18, 0
      %p101 = por %p99, %p100
      %s102 = ssub.s32 %s19, %s31
      %s103 = ssub.s32 %s20, %s27
      %s104 = sor.u32 %s102, %s103
      %p105 = scmp.eq.s32.totalorder %s104, 0
      %s107 = sadd.s32 %s106, 1
      %s108 = scalar_select %p105, %s106, %s107
      %p111 = pneg %p105
      %p112 = scmp.eq.s32.totalorder %s12, 1
      %p113 = por %p111, %p112
      %p114 = scmp.ne.s32.totalorder %s106, %s109
      %p115 = scmp.eq.s32.totalorder %s12, 0
      %p116 = por %p114, %p115
      %p117 = scmp.ne.s32.totalorder %s106, %s109
      %p118 = scmp.eq.s32.totalorder %s17, 1
      %p119 = por %p117, %p118
      %p120 = scmp.ne.s32.totalorder %s109, %s110
      %p121 = scmp.eq.s32.totalorder %s17, 0
      %p122 = por %p120, %p121
      %p123 = scmp.ne.s32.totalorder %s109, %s110
      %p124 = scmp.eq.s32.totalorder %s18, 1
      %p125 = por %p123, %p124
      %p127 = scmp.ne.s32.totalorder %s110, %s126
      %p128 = scmp.eq.s32.totalorder %s18, 0
      %p129 = por %p127, %p128
      %p130 = scmp.le.s32.totalorder 1, %s12
      %p131 = scmp.lt.s32.totalorder %s12, 3
      %p132 = pnand %p130, %p131
      %p133 = pneg %p132
      // Predicated region
      $region9: #{tpu_custom_call.1} parent=5 // pred_check
        _
      $region10: #{tpu_custom_call.1} parent=5 // pred_check_branch
        %135 = sbr.rel (%p132) target = $region12
      $region11: #{tpu_custom_call.1} parent=5 // pred_region
        %s136 = ssub.s32 %s12, 1
        // Predicated region
        $region13: #{tpu_custom_call.1} parent=11 // pred_check
          %p137 = pneg %p45
        $region14: #{tpu_custom_call.1} parent=11 // pred_check_branch
          %139 = sbr.rel (%p137) target = $region16
        $region15: #{tpu_custom_call.1} parent=11 // pred_region
          _
        $region16: #{tpu_custom_call.1} parent=11 // pred_fallthru
          _
        // Predicated region
        $region17: #{tpu_custom_call.1} parent=11 // pred_check
          %p140 = pneg %p66
        $region18: #{tpu_custom_call.1} parent=11 // pred_check_branch
          %142 = sbr.rel (%p140) target = $region20
        $region19: #{tpu_custom_call.1} parent=11 // pred_region
          _
        $region20: #{tpu_custom_call.1} parent=11 // pred_fallthru
          _
      $region12: #{tpu_custom_call.1} parent=5 // pred_fallthru
        _
      %p143 = scmp.lt.s32.totalorder %s12, 2
      // Predicated region
      $region21: #{tpu_custom_call.1} parent=5 // pred_check
        %p144 = pneg %p143
      $region22: #{tpu_custom_call.1} parent=5 // pred_check_branch
        %146 = sbr.rel (%p144) target = $region24
      $region23: #{tpu_custom_call.1} parent=5 // pred_region
        // Predicated region
        $region25: #{tpu_custom_call.1} parent=23 // pred_check
          %p147 = pneg %p88
        $region26: #{tpu_custom_call.1} parent=23 // pred_check_branch
          %149 = sbr.rel (%p147) target = $region28
        $region27: #{tpu_custom_call.1} parent=23 // pred_region
          %s150 = smul.u32 2, %s20
          %p151 = scmp.lt.s32.totalorder %s19, 1
          %s152 = scalar_select %p151, %s19, 1
          %p153 = scmp.lt.s32.totalorder %s150, 1
          %s154 = scalar_select %p153, %s150, 1
          %s155 = smul.addr %s152, 2
          %s156 = sadd.s32 %s154, %s155
          %s157 = smul.addr %s156, 4
          %s158 = scalar_lea.vmem %s2, %s157
          %s159 = smul.u32 2, %s20
        $region28: #{tpu_custom_call.1} parent=23 // pred_fallthru
          _
      $region24: #{tpu_custom_call.1} parent=5 // pred_fallthru
        _
      %p160 = scmp.le.s32.totalorder 1, %s12
      %p161 = scmp.lt.s32.totalorder %s12, 3
      %p162 = pnand %p160, %p161
      %p163 = pneg %p162
      // Predicated region
      $region29: #{tpu_custom_call.1} parent=5 // pred_check
        _
      $region30: #{tpu_custom_call.1} parent=5 // pred_check_branch
        %165 = sbr.rel (%p162) target = $region32
      $region31: #{tpu_custom_call.1} parent=5 // pred_region
        %s166 = ssub.s32 %s12, 1
        %p167 = pneg %p45
        %p168 = pneg %p42
        %p169 = pneg %p66
        %p170 = pneg %p63
        %s171 = smul.u32 2, %s22
        %p172 = scmp.lt.s32.totalorder %s21, 1
        %s173 = scalar_select %p172, %s21, 1
        %p174 = scmp.lt.s32.totalorder %s171, 1
        %s175 = scalar_select %p174, %s171, 1
        %s176 = smul.addr %s173, 2
        %s177 = sadd.s32 %s175, %s176
        %s178 = smul.addr %s177, 4
        %s179 = scalar_lea.vmem %s2, %s178
        %p180 = pneg %p94
        %p181 = pneg %p91
        %p182 = pneg %p122
        %p183 = pneg %p119
        %s184 = sand.u32 %s109, 1
        %s185 = scalar_lea.sflag [#allocation3], %s184
        %s186 = sand.u32 %s109, 1
        %s187 = smul.addr %s186, 64
        %s188 = scalar_lea.vmem [#allocation2], %s187
        %s189 = smul.u32 2, %s22
        %p190 = scmp.lt.s32.totalorder %s21, 1
        %s191 = scalar_select %p190, %s21, 1
        %p192 = scmp.lt.s32.totalorder %s189, 1
        %s193 = scalar_select %p192, %s189, 1
        %s194 = smul.addr %s191, 2
        %s195 = sadd.s32 %s193, %s194
        %s196 = smul.addr %s195, 4
        %s197 = scalar_lea.vmem %s2, %s196
        %s198 = smul.u32 2, %s22
        %s199 = smul.u32 2, %s22
        %v200 = vld [vmem:[%s0] sm:$0xff]
        %v201 = vld [vmem:[%s0 + $0x8] sm:$0xff]
        %v202 = vld [vmem:[%s0 + $0x10] sm:$0xff]
        %v203 = vld [vmem:[%s0 + $0x18] sm:$0xff]
        %v204 = vld [vmem:[%s197] sm:$0xff]
        %v205 = vld [vmem:[%s1] sm:$0xff]
        %v206 = vld [vmem:[%s1 + $0x8] sm:$0xff]
        %v207 = vld [vmem:[%s1 + $0x10] sm:$0xff]
        %v208 = vld [vmem:[%s1 + $0x18] sm:$0xff]
        %210 = vset.pattern.permute.xlu0 0
        %211 = vperm.xlu0 %210, %v205
        %v212 = vpop.permute.xlu0 %211
        %215 = vset.pattern.permute.xlu0 0
        %216 = vperm.xlu0 %215, %v206
        %v217 = vpop.permute.xlu0 %216
        %220 = vset.pattern.permute.xlu0 0
        %221 = vperm.xlu0 %220, %v207
        %v222 = vpop.permute.xlu0 %221
        %225 = vset.pattern.permute.xlu0 0
        %226 = vperm.xlu0 %225, %v208
        %v227 = vpop.permute.xlu0 %226
        %v230 = vcombine.high %v204, %v204
        %vm231 = vcmask 31744
        %v233 = vsel %vm231, %v200, 0
        %v236 = vsel %vm231, %v201, 0
        %v239 = vsel %vm231, %v202, 0
        %v242 = vsel %vm231, %v203, 0
        %vm244 = vcmask 1043456
        %v245 = vsel %vm244, %v204, 0
        %v247 = vsel %vm244, %v230, 0
        %v249 = vand.u32 %v247, 4294901760
        %250 = vmatprep.subr.mxu0 %v249
        %v251 = vand.u32 %v245, 4294901760
        %252 = vmatpush1.msra.mxu0 %v251
        %253 = vmatprep.subr.mxu0 0.0
        %254 = vmatpush1.msra.mxu0 0.0
        %255 = vmatprep.subr.mxu0 0.0
        %256 = vmatpush1.msra.mxu0 0.0
        %257 = vmatprep.subr.mxu0 0.0
        %258 = vmatpush1.msra.mxu0 0.0
        %259 = vmatprep.subr.mxu0 0.0
        %260 = vmatpush1.msra.mxu0 0.0
        %261 = vmatprep.subr.mxu0 0.0
        %262 = vmatpush1.msra.mxu0 0.0
        %263 = vmatprep.subr.mxu0 0.0
        %264 = vmatpush1.msra.mxu0 0.0
        %265 = vmatprep.subr.mxu0 0.0
        %266 = vmatpush1.msra.mxu0 0.0
        %267 = vmatprep.subr.mxu0 0.0
        %268 = vmatpush1.msra.mxu0 0.0
        %269 = vmatprep.subr.mxu0 0.0
        %270 = vmatpush1.msra.mxu0 0.0
        %271 = vmatprep.subr.mxu0 0.0
        %272 = vmatpush1.msra.mxu0 0.0
        %273 = vmatprep.subr.mxu0 0.0
        %274 = vmatpush1.msra.mxu0 0.0
        %275 = vmatprep.subr.mxu0 0.0
        %276 = vmatpush1.msra.mxu0 0.0
        %277 = vmatprep.subr.mxu0 0.0
        %278 = vmatpush1.msra.mxu0 0.0
        %279 = vmatprep.subr.mxu0 0.0
        %280 = vmatpush1.msra.mxu0 0.0
        %281 = vmatprep.subr.mxu0 0.0
        %282 = vmatpush1.msra.mxu0 0.0
        %283 = vmatprep.subr.mxu0 0.0
        %284 = vmatpush1.msra.mxu0 0.0
        %285 = vmatprep.subr.mxu0 0.0
        %286 = vmatpush1.msra.mxu0 0.0
        %287 = vmatprep.subr.mxu0 0.0
        %288 = vmatpush1.msra.mxu0 0.0
        %289 = vmatprep.subr.mxu0 0.0
        %290 = vmatpush1.msra.mxu0 0.0
        %291 = vmatprep.subr.mxu0 0.0
        %292 = vmatpush1.msra.mxu0 0.0
        %293 = vmatprep.subr.mxu0 0.0
        %294 = vmatpush1.msra.mxu0 0.0
        %295 = vmatprep.subr.mxu0 0.0
        %296 = vmatpush1.msra.mxu0 0.0
        %297 = vmatprep.subr.mxu0 0.0
        %298 = vmatpush1.msra.mxu0 0.0
        %299 = vmatprep.subr.mxu0 0.0
        %300 = vmatpush1.msra.mxu0 0.0
        %301 = vmatprep.subr.mxu0 0.0
        %302 = vmatpush1.msra.mxu0 0.0
        %303 = vmatprep.subr.mxu0 0.0
        %304 = vmatpush1.msra.mxu0 0.0
        %305 = vmatprep.subr.mxu0 0.0
        %306 = vmatpush1.msra.mxu0 0.0
        %307 = vmatprep.subr.mxu0 0.0
        %308 = vmatpush1.msra.mxu0 0.0
        %309 = vmatprep.subr.mxu0 0.0
        %310 = vmatpush1.msra.mxu0 0.0
        %311 = vmatprep.subr.mxu0 0.0
        %312 = vmatpush1.msra.mxu0 0.0
        %313 = vmatprep.subr.mxu0 0.0
        %314 = vmatpush1.msra.mxu0 0.0
        %315 = vmatprep.mubr.f32.mxu0 0.0
        %v316 = vand.u32 %v233, 4294901760
        %v317 = vsub.f32 %v233, %v316
        %v318 = vand.u32 %v317, 4294901760
        %v319 = vsub.f32 %v317, %v318
        %v320 = vand.u32 %v319, 4294901760
        %321 = vmatmul.mubr.f32.gmra.mrb[0].mxu0 %v320
        %v322 = vpop.f32.mrb[0].mxu0
        %v323 = vadd.f32 %v212, %v322
        %v324 = vpop.f32.mrb[0].mxu0
        %v325 = vadd.f32 %v212, %v324
        %326 = vmatprep.mubr.f32.mxu0 0.0
        %v327 = vand.u32 %v236, 4294901760
        %v328 = vsub.f32 %v236, %v327
        %v329 = vand.u32 %v328, 4294901760
        %v330 = vsub.f32 %v328, %v329
        %v331 = vand.u32 %v330, 4294901760
        %332 = vmatmul.mubr.f32.gmra.mrb[0].mxu0 %v331
        %v333 = vpop.f32.mrb[0].mxu0
        %v334 = vadd.f32 %v217, %v333
        %v335 = vpop.f32.mrb[0].mxu0
        %v336 = vadd.f32 %v217, %v335
        %337 = vmatprep.mubr.f32.mxu0 0.0
        %v338 = vand.u32 %v239, 4294901760
        %v339 = vsub.f32 %v239, %v338
        %v340 = vand.u32 %v339, 4294901760
        %v341 = vsub.f32 %v339, %v340
        %v342 = vand.u32 %v341, 4294901760
        %343 = vmatmul.mubr.f32.gmra.mrb[0].mxu0 %v342
        %v344 = vpop.f32.mrb[0].mxu0
        %v345 = vadd.f32 %v222, %v344
        %v346 = vpop.f32.mrb[0].mxu0
        %v347 = vadd.f32 %v222, %v346
        %348 = vmatprep.mubr.f32.mxu0 0.0
        %v349 = vand.u32 %v242, 4294901760
        %v350 = vsub.f32 %v242, %v349
        %v351 = vand.u32 %v350, 4294901760
        %v352 = vsub.f32 %v350, %v351
        %v353 = vand.u32 %v352, 4294901760
        %354 = vmatmul.mubr.f32.gmra.mrb[0].mxu0 %v353
        %v355 = vpop.f32.mrb[0].mxu0
        %v356 = vadd.f32 %v227, %v355
        %v357 = vpop.f32.mrb[0].mxu0
        %v358 = vadd.f32 %v227, %v357
        %359 = vdwg.mxu0
        %v360 = vand.u32 %v247, 4294901760
        %v361 = vsub.f32 %v247, %v360
        %v362 = vand.u32 %v361, 4294901760
        %v363 = vsub.f32 %v361, %v362
        %v364 = vand.u32 %v363, 4294901760
        %365 = vmatprep.subr.mxu0 %v364
        %v366 = vand.u32 %v245, 4294901760
        %v367 = vsub.f32 %v245, %v366
        %v368 = vand.u32 %v367, 4294901760
        %v369 = vsub.f32 %v367, %v368
        %v370 = vand.u32 %v369, 4294901760
        %371 = vmatpush1.msra.mxu0 %v370
        %372 = vmatprep.subr.mxu0 0.0
        %373 = vmatpush1.msra.mxu0 0.0
        %374 = vmatprep.subr.mxu0 0.0
        %375 = vmatpush1.msra.mxu0 0.0
        %376 = vmatprep.subr.mxu0 0.0
        %377 = vmatpush1.msra.mxu0 0.0
        %378 = vmatprep.subr.mxu0 0.0
        %379 = vmatpush1.msra.mxu0 0.0
        %380 = vmatprep.subr.mxu0 0.0
        %381 = vmatpush1.msra.mxu0 0.0
        %382 = vmatprep.subr.mxu0 0.0
        %383 = vmatpush1.msra.mxu0 0.0
        %384 = vmatprep.subr.mxu0 0.0
        %385 = vmatpush1.msra.mxu0 0.0
        %386 = vmatprep.subr.mxu0 0.0
        %387 = vmatpush1.msra.mxu0 0.0
        %388 = vmatprep.subr.mxu0 0.0
        %389 = vmatpush1.msra.mxu0 0.0
        %390 = vmatprep.subr.mxu0 0.0
        %391 = vmatpush1.msra.mxu0 0.0
        %392 = vmatprep.subr.mxu0 0.0
        %393 = vmatpush1.msra.mxu0 0.0
        %394 = vmatprep.subr.mxu0 0.0
        %395 = vmatpush1.msra.mxu0 0.0
        %396 = vmatprep.subr.mxu0 0.0
        %397 = vmatpush1.msra.mxu0 0.0
        %398 = vmatprep.subr.mxu0 0.0
        %399 = vmatpush1.msra.mxu0 0.0
        %400 = vmatprep.subr.mxu0 0.0
        %401 = vmatpush1.msra.mxu0 0.0
        %402 = vmatprep.subr.mxu0 0.0
        %403 = vmatpush1.msra.mxu0 0.0
        %404 = vmatprep.subr.mxu0 0.0
        %405 = vmatpush1.msra.mxu0 0.0
        %406 = vmatprep.subr.mxu0 0.0
        %407 = vmatpush1.msra.mxu0 0.0
        %408 = vmatprep.subr.mxu0 0.0
        %409 = vmatpush1.msra.mxu0 0.0
        %410 = vmatprep.subr.mxu0 0.0
        %411 = vmatpush1.msra.mxu0 0.0
        %412 = vmatprep.subr.mxu0 0.0
        %413 = vmatpush1.msra.mxu0 0.0
        %414 = vmatprep.subr.mxu0 0.0
        %415 = vmatpush1.msra.mxu0 0.0
        %416 = vmatprep.subr.mxu0 0.0
        %417 = vmatpush1.msra.mxu0 0.0
        %418 = vmatprep.subr.mxu0 0.0
        %419 = vmatpush1.msra.mxu0 0.0
        %420 = vmatprep.subr.mxu0 0.0
        %421 = vmatpush1.msra.mxu0 0.0
        %422 = vmatprep.subr.mxu0 0.0
        %423 = vmatpush1.msra.mxu0 0.0
        %424 = vmatprep.subr.mxu0 0.0
        %425 = vmatpush1.msra.mxu0 0.0
        %426 = vmatprep.subr.mxu0 0.0
        %427 = vmatpush1.msra.mxu0 0.0
        %428 = vmatprep.subr.mxu0 0.0
        %429 = vmatpush1.msra.mxu0 0.0
        %430 = vmatprep.subr.mxu0 0.0
        %431 = vmatpush1.msra.mxu0 0.0
        %432 = vmatprep.subr.mxu0 0.0
        %433 = vmatpush1.msra.mxu0 0.0
        %434 = vmatprep.mubr.f32.mxu0 0.0
        %v435 = vand.u32 %v233, 4294901760
        %436 = vmatmul.mubr.f32.gmra.mrb[0].mxu0 %v435
        %v437 = vpop.f32.mrb[0].mxu0
        %v438 = vadd.f32 %v323, %v437
        %v439 = vpop.f32.mrb[0].mxu0
        %v440 = vadd.f32 %v325, %v439
        %441 = vmatprep.mubr.f32.mxu0 0.0
        %v442 = vand.u32 %v236, 4294901760
        %443 = vmatmul.mubr.f32.gmra.mrb[0].mxu0 %v442
        %v444 = vpop.f32.mrb[0].mxu0
        %v445 = vadd.f32 %v334, %v444
        %v446 = vpop.f32.mrb[0].mxu0
        %v447 = vadd.f32 %v336, %v446
        %448 = vmatprep.mubr.f32.mxu0 0.0
        %v449 = vand.u32 %v239, 4294901760
        %450 = vmatmul.mubr.f32.gmra.mrb[0].mxu0 %v449
        %v451 = vpop.f32.mrb[0].mxu0
        %v452 = vadd.f32 %v345, %v451
        %v453 = vpop.f32.mrb[0].mxu0
        %v454 = vadd.f32 %v347, %v453
        %455 = vmatprep.mubr.f32.mxu0 0.0
        %v456 = vand.u32 %v242, 4294901760
        %457 = vmatmul.mubr.f32.gmra.mrb[0].mxu0 %v456
        %v458 = vpop.f32.mrb[0].mxu0
        %v459 = vadd.f32 %v356, %v458
        %v460 = vpop.f32.mrb[0].mxu0
        %v461 = vadd.f32 %v358, %v460
        %462 = vdwg.mxu0
        %v463 = vand.u32 %v247, 4294901760
        %v464 = vsub.f32 %v247, %v463
        %465 = vmatprep.subr.mxu0 %v464
        %v466 = vand.u32 %v245, 4294901760
        %v467 = vsub.f32 %v245, %v466
        %468 = vmatpush1.msra.mxu0 %v467
        %469 = vmatprep.subr.mxu0 0.0
        %470 = vmatpush1.msra.mxu0 0.0
        %471 = vmatprep.subr.mxu0 0.0
        %472 = vmatpush1.msra.mxu0 0.0
        %473 = vmatprep.subr.mxu0 0.0
        %474 = vmatpush1.msra.mxu0 0.0
        %475 = vmatprep.subr.mxu0 0.0
        %476 = vmatpush1.msra.mxu0 0.0
        %477 = vmatprep.subr.mxu0 0.0
        %478 = vmatpush1.msra.mxu0 0.0
        %479 = vmatprep.subr.mxu0 0.0
        %480 = vmatpush1.msra.mxu0 0.0
        %481 = vmatprep.subr.mxu0 0.0
        %482 = vmatpush1.msra.mxu0 0.0
        %483 = vmatprep.subr.mxu0 0.0
        %484 = vmatpush1.msra.mxu0 0.0
        %485 = vmatprep.subr.mxu0 0.0
        %486 = vmatpush1.msra.mxu0 0.0
        %487 = vmatprep.subr.mxu0 0.0
        %488 = vmatpush1.msra.mxu0 0.0
        %489 = vmatprep.subr.mxu0 0.0
        %490 = vmatpush1.msra.mxu0 0.0
        %491 = vmatprep.subr.mxu0 0.0
        %492 = vmatpush1.msra.mxu0 0.0
        %493 = vmatprep.subr.mxu0 0.0
        %494 = vmatpush1.msra.mxu0 0.0
        %495 = vmatprep.subr.mxu0 0.0
        %496 = vmatpush1.msra.mxu0 0.0
        %497 = vmatprep.subr.mxu0 0.0
        %498 = vmatpush1.msra.mxu0 0.0
        %499 = vmatprep.subr.mxu0 0.0
        %500 = vmatpush1.msra.mxu0 0.0
        %501 = vmatprep.subr.mxu0 0.0
        %502 = vmatpush1.msra.mxu0 0.0
        %503 = vmatprep.subr.mxu0 0.0
        %504 = vmatpush1.msra.mxu0 0.0
        %505 = vmatprep.subr.mxu0 0.0
        %506 = vmatpush1.msra.mxu0 0.0
        %507 = vmatprep.subr.mxu0 0.0
        %508 = vmatpush1.msra.mxu0 0.0
        %509 = vmatprep.subr.mxu0 0.0
        %510 = vmatpush1.msra.mxu0 0.0
        %511 = vmatprep.subr.mxu0 0.0
        %512 = vmatpush1.msra.mxu0 0.0
        %513 = vmatprep.subr.mxu0 0.0
        %514 = vmatpush1.msra.mxu0 0.0
        %515 = vmatprep.subr.mxu0 0.0
        %516 = vmatpush1.msra.mxu0 0.0
        %517 = vmatprep.subr.mxu0 0.0
        %518 = vmatpush1.msra.mxu0 0.0
        %519 = vmatprep.subr.mxu0 0.0
        %520 = vmatpush1.msra.mxu0 0.0
        %521 = vmatprep.subr.mxu0 0.0
        %522 = vmatpush1.msra.mxu0 0.0
        %523 = vmatprep.subr.mxu0 0.0
        %524 = vmatpush1.msra.mxu0 0.0
        %525 = vmatprep.subr.mxu0 0.0
        %526 = vmatpush1.msra.mxu0 0.0
        %527 = vmatprep.subr.mxu0 0.0
        %528 = vmatpush1.msra.mxu0 0.0
        %529 = vmatprep.subr.mxu0 0.0
        %530 = vmatpush1.msra.mxu0 0.0
        %531 = vmatprep.mubr.f32.mxu0 0.0
        %v532 = vand.u32 %v233, 4294901760
        %v533 = vsub.f32 %v233, %v532
        %534 = vmatmul.mubr.f32.gmra.mrb[0].mxu0 %v533
        %v535 = vpop.f32.mrb[0].mxu0
        %v536 = vadd.f32 %v438, %v535
        %v537 = vpop.f32.mrb[0].mxu0
        %v538 = vadd.f32 %v440, %v537
        %539 = vmatprep.mubr.f32.mxu0 0.0
        %v540 = vand.u32 %v236, 4294901760
        %v541 = vsub.f32 %v236, %v540
        %542 = vmatmul.mubr.f32.gmra.mrb[0].mxu0 %v541
        %v543 = vpop.f32.mrb[0].mxu0
        %v544 = vadd.f32 %v445, %v543
        %v545 = vpop.f32.mrb[0].mxu0
        %v546 = vadd.f32 %v447, %v545
        %547 = vmatprep.mubr.f32.mxu0 0.0
        %v548 = vand.u32 %v239, 4294901760
        %v549 = vsub.f32 %v239, %v548
        %550 = vmatmul.mubr.f32.gmra.mrb[0].mxu0 %v549
        %v551 = vpop.f32.mrb[0].mxu0
        %v552 = vadd.f32 %v452, %v551
        %v553 = vpop.f32.mrb[0].mxu0
        %v554 = vadd.f32 %v454, %v553
        %555 = vmatprep.mubr.f32.mxu0 0.0
        %v556 = vand.u32 %v242, 4294901760
        %v557 = vsub.f32 %v242, %v556
        %558 = vmatmul.mubr.f32.gmra.mrb[0].mxu0 %v557
        %v559 = vpop.f32.mrb[0].mxu0
        %v560 = vadd.f32 %v459, %v559
        %v561 = vpop.f32.mrb[0].mxu0
        %v562 = vadd.f32 %v461, %v561
        %563 = vdwg.mxu0
        %v564 = vand.u32 %v247, 4294901760
        %565 = vmatprep.subr.mxu0 %v564
        %v566 = vand.u32 %v245, 4294901760
        %567 = vmatpush1.msra.mxu0 %v566
        %568 = vmatprep.subr.mxu0 0.0
        %569 = vmatpush1.msra.mxu0 0.0
        %570 = vmatprep.subr.mxu0 0.0
        %571 = vmatpush1.msra.mxu0 0.0
        %572 = vmatprep.subr.mxu0 0.0
        %573 = vmatpush1.msra.mxu0 0.0
        %574 = vmatprep.subr.mxu0 0.0
        %575 = vmatpush1.msra.mxu0 0.0
        %576 = vmatprep.subr.mxu0 0.0
        %577 = vmatpush1.msra.mxu0 0.0
        %578 = vmatprep.subr.mxu0 0.0
        %579 = vmatpush1.msra.mxu0 0.0
        %580 = vmatprep.subr.mxu0 0.0
        %581 = vmatpush1.msra.mxu0 0.0
        %582 = vmatprep.subr.mxu0 0.0
        %583 = vmatpush1.msra.mxu0 0.0
        %584 = vmatprep.subr.mxu0 0.0
        %585 = vmatpush1.msra.mxu0 0.0
        %586 = vmatprep.subr.mxu0 0.0
        %587 = vmatpush1.msra.mxu0 0.0
        %588 = vmatprep.subr.mxu0 0.0
        %589 = vmatpush1.msra.mxu0 0.0
        %590 = vmatprep.subr.mxu0 0.0
        %591 = vmatpush1.msra.mxu0 0.0
        %592 = vmatprep.subr.mxu0 0.0
        %593 = vmatpush1.msra.mxu0 0.0
        %594 = vmatprep.subr.mxu0 0.0
        %595 = vmatpush1.msra.mxu0 0.0
        %596 = vmatprep.subr.mxu0 0.0
        %597 = vmatpush1.msra.mxu0 0.0
        %598 = vmatprep.subr.mxu0 0.0
        %599 = vmatpush1.msra.mxu0 0.0
        %600 = vmatprep.subr.mxu0 0.0
        %601 = vmatpush1.msra.mxu0 0.0
        %602 = vmatprep.subr.mxu0 0.0
        %603 = vmatpush1.msra.mxu0 0.0
        %604 = vmatprep.subr.mxu0 0.0
        %605 = vmatpush1.msra.mxu0 0.0
        %606 = vmatprep.subr.mxu0 0.0
        %607 = vmatpush1.msra.mxu0 0.0
        %608 = vmatprep.subr.mxu0 0.0
        %609 = vmatpush1.msra.mxu0 0.0
        %610 = vmatprep.subr.mxu0 0.0
        %611 = vmatpush1.msra.mxu0 0.0
        %612 = vmatprep.subr.mxu0 0.0
        %613 = vmatpush1.msra.mxu0 0.0
        %614 = vmatprep.subr.mxu0 0.0
        %615 = vmatpush1.msra.mxu0 0.0
        %616 = vmatprep.subr.mxu0 0.0
        %617 = vmatpush1.msra.mxu0 0.0
        %618 = vmatprep.subr.mxu0 0.0
        %619 = vmatpush1.msra.mxu0 0.0
        %620 = vmatprep.subr.mxu0 0.0
        %621 = vmatpush1.msra.mxu0 0.0
        %622 = vmatprep.subr.mxu0 0.0
        %623 = vmatpush1.msra.mxu0 0.0
        %624 = vmatprep.subr.mxu0 0.0
        %625 = vmatpush1.msra.mxu0 0.0
        %626 = vmatprep.subr.mxu0 0.0
        %627 = vmatpush1.msra.mxu0 0.0
        %628 = vmatprep.subr.mxu0 0.0
        %629 = vmatpush1.msra.mxu0 0.0
        %630 = vmatprep.mubr.f32.mxu0 0.0
        %v631 = vand.u32 %v233, 4294901760
        %v632 = vsub.f32 %v233, %v631
        %v633 = vand.u32 %v632, 4294901760
        %634 = vmatmul.mubr.f32.gmra.mrb[0].mxu0 %v633
        %v635 = vpop.f32.mrb[0].mxu0
        %v636 = vadd.f32 %v536, %v635
        %v637 = vpop.f32.mrb[0].mxu0
        %v638 = vadd.f32 %v538, %v637
        %639 = vmatprep.mubr.f32.mxu0 0.0
        %v640 = vand.u32 %v236, 4294901760
        %v641 = vsub.f32 %v236, %v640
        %v642 = vand.u32 %v641, 4294901760
        %643 = vmatmul.mubr.f32.gmra.mrb[0].mxu0 %v642
        %v644 = vpop.f32.mrb[0].mxu0
        %v645 = vadd.f32 %v544, %v644
        %v646 = vpop.f32.mrb[0].mxu0
        %v647 = vadd.f32 %v546, %v646
        %648 = vmatprep.mubr.f32.mxu0 0.0
        %v649 = vand.u32 %v239, 4294901760
        %v650 = vsub.f32 %v239, %v649
        %v651 = vand.u32 %v650, 4294901760
        %652 = vmatmul.mubr.f32.gmra.mrb[0].mxu0 %v651
        %v653 = vpop.f32.mrb[0].mxu0
        %v654 = vadd.f32 %v552, %v653
        %v655 = vpop.f32.mrb[0].mxu0
        %v656 = vadd.f32 %v554, %v655
        %657 = vmatprep.mubr.f32.mxu0 0.0
        %v658 = vand.u32 %v242, 4294901760
        %v659 = vsub.f32 %v242, %v658
        %v660 = vand.u32 %v659, 4294901760
        %661 = vmatmul.mubr.f32.gmra.mrb[0].mxu0 %v660
        %v662 = vpop.f32.mrb[0].mxu0
        %v663 = vadd.f32 %v560, %v662
        %v664 = vpop.f32.mrb[0].mxu0
        %v665 = vadd.f32 %v562, %v664
        %666 = vdwg.mxu0
        %v667 = vand.u32 %v247, 4294901760
        %v668 = vsub.f32 %v247, %v667
        %v669 = vand.u32 %v668, 4294901760
        %670 = vmatprep.subr.mxu0 %v669
        %v671 = vand.u32 %v245, 4294901760
        %v672 = vsub.f32 %v245, %v671
        %v673 = vand.u32 %v672, 4294901760
        %674 = vmatpush1.msra.mxu0 %v673
        %675 = vmatprep.subr.mxu0 0.0
        %676 = vmatpush1.msra.mxu0 0.0
        %677 = vmatprep.subr.mxu0 0.0
        %678 = vmatpush1.msra.mxu0 0.0
        %679 = vmatprep.subr.mxu0 0.0
        %680 = vmatpush1.msra.mxu0 0.0
        %681 = vmatprep.subr.mxu0 0.0
        %682 = vmatpush1.msra.mxu0 0.0
        %683 = vmatprep.subr.mxu0 0.0
        %684 = vmatpush1.msra.mxu0 0.0
        %685 = vmatprep.subr.mxu0 0.0
        %686 = vmatpush1.msra.mxu0 0.0
        %687 = vmatprep.subr.mxu0 0.0
        %688 = vmatpush1.msra.mxu0 0.0
        %689 = vmatprep.subr.mxu0 0.0
        %690 = vmatpush1.msra.mxu0 0.0
        %691 = vmatprep.subr.mxu0 0.0
        %692 = vmatpush1.msra.mxu0 0.0
        %693 = vmatprep.subr.mxu0 0.0
        %694 = vmatpush1.msra.mxu0 0.0
        %695 = vmatprep.subr.mxu0 0.0
        %696 = vmatpush1.msra.mxu0 0.0
        %697 = vmatprep.subr.mxu0 0.0
        %698 = vmatpush1.msra.mxu0 0.0
        %699 = vmatprep.subr.mxu0 0.0
        %700 = vmatpush1.msra.mxu0 0.0
        %701 = vmatprep.subr.mxu0 0.0
        %702 = vmatpush1.msra.mxu0 0.0
        %703 = vmatprep.subr.mxu0 0.0
        %704 = vmatpush1.msra.mxu0 0.0
        %705 = vmatprep.subr.mxu0 0.0
        %706 = vmatpush1.msra.mxu0 0.0
        %707 = vmatprep.subr.mxu0 0.0
        %708 = vmatpush1.msra.mxu0 0.0
        %709 = vmatprep.subr.mxu0 0.0
        %710 = vmatpush1.msra.mxu0 0.0
        %711 = vmatprep.subr.mxu0 0.0
        %712 = vmatpush1.msra.mxu0 0.0
        %713 = vmatprep.subr.mxu0 0.0
        %714 = vmatpush1.msra.mxu0 0.0
        %715 = vmatprep.subr.mxu0 0.0
        %716 = vmatpush1.msra.mxu0 0.0
        %717 = vmatprep.subr.mxu0 0.0
        %718 = vmatpush1.msra.mxu0 0.0
        %719 = vmatprep.subr.mxu0 0.0
        %720 = vmatpush1.msra.mxu0 0.0
        %721 = vmatprep.subr.mxu0 0.0
        %722 = vmatpush1.msra.mxu0 0.0
        %723 = vmatprep.subr.mxu0 0.0
        %724 = vmatpush1.msra.mxu0 0.0
        %725 = vmatprep.subr.mxu0 0.0
        %726 = vmatpush1.msra.mxu0 0.0
        %727 = vmatprep.subr.mxu0 0.0
        %728 = vmatpush1.msra.mxu0 0.0
        %729 = vmatprep.subr.mxu0 0.0
        %730 = vmatpush1.msra.mxu0 0.0
        %731 = vmatprep.subr.mxu0 0.0
        %732 = vmatpush1.msra.mxu0 0.0
        %733 = vmatprep.subr.mxu0 0.0
        %734 = vmatpush1.msra.mxu0 0.0
        %735 = vmatprep.subr.mxu0 0.0
        %736 = vmatpush1.msra.mxu0 0.0
        %737 = vmatprep.mubr.f32.mxu0 0.0
        %v738 = vand.u32 %v233, 4294901760
        %739 = vmatmul.mubr.f32.gmra.mrb[0].mxu0 %v738
        %v740 = vpop.f32.mrb[0].mxu0
        %v741 = vadd.f32 %v636, %v740
        %v742 = vpop.f32.mrb[0].mxu0
        %v743 = vadd.f32 %v638, %v742
        %744 = vmatprep.mubr.f32.mxu0 0.0
        %v745 = vand.u32 %v236, 4294901760
        %746 = vmatmul.mubr.f32.gmra.mrb[0].mxu0 %v745
        %v747 = vpop.f32.mrb[0].mxu0
        %v748 = vadd.f32 %v645, %v747
        %v749 = vpop.f32.mrb[0].mxu0
        %v750 = vadd.f32 %v647, %v749
        %751 = vmatprep.mubr.f32.mxu0 0.0
        %v752 = vand.u32 %v239, 4294901760
        %753 = vmatmul.mubr.f32.gmra.mrb[0].mxu0 %v752
        %v754 = vpop.f32.mrb[0].mxu0
        %v755 = vadd.f32 %v654, %v754
        %v756 = vpop.f32.mrb[0].mxu0
        %v757 = vadd.f32 %v656, %v756
        %758 = vmatprep.mubr.f32.mxu0 0.0
        %v759 = vand.u32 %v242, 4294901760
        %760 = vmatmul.mubr.f32.gmra.mrb[0].mxu0 %v759
        %v761 = vpop.f32.mrb[0].mxu0
        %v762 = vadd.f32 %v663, %v761
        %v763 = vpop.f32.mrb[0].mxu0
        %v764 = vadd.f32 %v665, %v763
        %765 = vdwg.mxu0
        %v766 = vand.u32 %v247, 4294901760
        %767 = vmatprep.subr.mxu0 %v766
        %v768 = vand.u32 %v245, 4294901760
        %769 = vmatpush1.msra.mxu0 %v768
        %770 = vmatprep.subr.mxu0 0.0
        %771 = vmatpush1.msra.mxu0 0.0
        %772 = vmatprep.subr.mxu0 0.0
        %773 = vmatpush1.msra.mxu0 0.0
        %774 = vmatprep.subr.mxu0 0.0
        %775 = vmatpush1.msra.mxu0 0.0
        %776 = vmatprep.subr.mxu0 0.0
        %777 = vmatpush1.msra.mxu0 0.0
        %778 = vmatprep.subr.mxu0 0.0
        %779 = vmatpush1.msra.mxu0 0.0
        %780 = vmatprep.subr.mxu0 0.0
        %781 = vmatpush1.msra.mxu0 0.0
        %782 = vmatprep.subr.mxu0 0.0
        %783 = vmatpush1.msra.mxu0 0.0
        %784 = vmatprep.subr.mxu0 0.0
        %785 = vmatpush1.msra.mxu0 0.0
        %786 = vmatprep.subr.mxu0 0.0
        %787 = vmatpush1.msra.mxu0 0.0
        %788 = vmatprep.subr.mxu0 0.0
        %789 = vmatpush1.msra.mxu0 0.0
        %790 = vmatprep.subr.mxu0 0.0
        %791 = vmatpush1.msra.mxu0 0.0
        %792 = vmatprep.subr.mxu0 0.0
        %793 = vmatpush1.msra.mxu0 0.0
        %794 = vmatprep.subr.mxu0 0.0
        %795 = vmatpush1.msra.mxu0 0.0
        %796 = vmatprep.subr.mxu0 0.0
        %797 = vmatpush1.msra.mxu0 0.0
        %798 = vmatprep.subr.mxu0 0.0
        %799 = vmatpush1.msra.mxu0 0.0
        %800 = vmatprep.subr.mxu0 0.0
        %801 = vmatpush1.msra.mxu0 0.0
        %802 = vmatprep.subr.mxu0 0.0
        %803 = vmatpush1.msra.mxu0 0.0
        %804 = vmatprep.subr.mxu0 0.0
        %805 = vmatpush1.msra.mxu0 0.0
        %806 = vmatprep.subr.mxu0 0.0
        %807 = vmatpush1.msra.mxu0 0.0
        %808 = vmatprep.subr.mxu0 0.0
        %809 = vmatpush1.msra.mxu0 0.0
        %810 = vmatprep.subr.mxu0 0.0
        %811 = vmatpush1.msra.mxu0 0.0
        %812 = vmatprep.subr.mxu0 0.0
        %813 = vmatpush1.msra.mxu0 0.0
        %814 = vmatprep.subr.mxu0 0.0
        %815 = vmatpush1.msra.mxu0 0.0
        %816 = vmatprep.subr.mxu0 0.0
        %817 = vmatpush1.msra.mxu0 0.0
        %818 = vmatprep.subr.mxu0 0.0
        %819 = vmatpush1.msra.mxu0 0.0
        %820 = vmatprep.subr.mxu0 0.0
        %821 = vmatpush1.msra.mxu0 0.0
        %822 = vmatprep.subr.mxu0 0.0
        %823 = vmatpush1.msra.mxu0 0.0
        %824 = vmatprep.subr.mxu0 0.0
        %825 = vmatpush1.msra.mxu0 0.0
        %826 = vmatprep.subr.mxu0 0.0
        %827 = vmatpush1.msra.mxu0 0.0
        %828 = vmatprep.subr.mxu0 0.0
        %829 = vmatpush1.msra.mxu0 0.0
        %830 = vmatprep.subr.mxu0 0.0
        %831 = vmatpush1.msra.mxu0 0.0
        %832 = vmatprep.mubr.f32.mxu0 0.0
        %v833 = vand.u32 %v233, 4294901760
        %834 = vmatmul.mubr.f32.gmra.mrb[0].mxu0 %v833
        %v835 = vpop.f32.mrb[0].mxu0
        %v836 = vadd.f32 %v741, %v835
        %v837 = vpop.f32.mrb[0].mxu0
        %v838 = vadd.f32 %v743, %v837
        %839 = vmatprep.mubr.f32.mxu0 0.0
        %v840 = vand.u32 %v236, 4294901760
        %841 = vmatmul.mubr.f32.gmra.mrb[0].mxu0 %v840
        %v842 = vpop.f32.mrb[0].mxu0
        %v843 = vadd.f32 %v748, %v842
        %v844 = vpop.f32.mrb[0].mxu0
        %v845 = vadd.f32 %v750, %v844
        %846 = vmatprep.mubr.f32.mxu0 0.0
        %v847 = vand.u32 %v239, 4294901760
        %848 = vmatmul.mubr.f32.gmra.mrb[0].mxu0 %v847
        %v849 = vpop.f32.mrb[0].mxu0
        %v850 = vadd.f32 %v755, %v849
        %v851 = vpop.f32.mrb[0].mxu0
        %v852 = vadd.f32 %v757, %v851
        %853 = vmatprep.mubr.f32.mxu0 0.0
        %v854 = vand.u32 %v242, 4294901760
        %855 = vmatmul.mubr.f32.gmra.mrb[0].mxu0 %v854
        %v856 = vpop.f32.mrb[0].mxu0
        %v857 = vadd.f32 %v762, %v856
        %v858 = vpop.f32.mrb[0].mxu0
        %v859 = vadd.f32 %v764, %v858
        %860 = vdwg.mxu0
        %vm861 = vcmp.ge.f32.partialorder %v836, 0.0
        %vm862 = vcmp.ge.f32.partialorder %v838, 0.0
        %vm863 = vcmp.ge.f32.partialorder %v843, 0.0
        %vm864 = vcmp.ge.f32.partialorder %v845, 0.0
        %vm865 = vcmp.ge.f32.partialorder %v850, 0.0
        %vm866 = vcmp.ge.f32.partialorder %v852, 0.0
        %vm867 = vcmp.ge.f32.partialorder %v857, 0.0
        %vm868 = vcmp.ge.f32.partialorder %v859, 0.0
        %v869 = vmul.f32 %v836, 0.01
        %v870 = vmul.f32 %v838, 0.01
        %v871 = vmul.f32 %v843, 0.01
        %v872 = vmul.f32 %v845, 0.01
        %v873 = vmul.f32 %v850, 0.01
        %v874 = vmul.f32 %v852, 0.01
        %v875 = vmul.f32 %v857, 0.01
        %v876 = vmul.f32 %v859, 0.01
        %v877 = vsel %vm861, %v836, %v869
        %v878 = vsel %vm862, %v838, %v870
        %v879 = vsel %vm863, %v843, %v871
        %v880 = vsel %vm864, %v845, %v872
        %v881 = vsel %vm865, %v850, %v873
        %v882 = vsel %vm866, %v852, %v874
        %v883 = vsel %vm867, %v857, %v875
        %v884 = vsel %vm868, %v859, %v876
        %885 = vst [vmem:[%s188] sm:$0xff] %v877
        %886 = vst [vmem:[%s188 + $0x8] sm:$0xff] %v878
        %887 = vst [vmem:[%s188 + $0x10] sm:$0xff] %v879
        %888 = vst [vmem:[%s188 + $0x18] sm:$0xff] %v880
        %889 = vst [vmem:[%s188 + $0x20] sm:$0xff] %v881
        %890 = vst [vmem:[%s188 + $0x28] sm:$0xff] %v882
        %891 = vst [vmem:[%s188 + $0x30] sm:$0xff] %v883
        %892 = vst [vmem:[%s188 + $0x38] sm:$0xff] %v884
        %s893 = sand.u32 %s109, 1
        %s894 = scalar_lea.sflag [#allocation3], %s893
        %s895 = sand.u32 %s109, 1
        %s896 = smul.addr %s895, 64
        %s897 = scalar_lea.vmem [#allocation2], %s896
        // Predicated region
        $region33: #{tpu_custom_call.1} parent=31 // pred_check
          %p898 = pneg %p119
        $region34: #{tpu_custom_call.1} parent=31 // pred_check_branch
          %900 = sbr.rel (%p898) target = $region36
        $region35: #{tpu_custom_call.1} parent=31 // pred_region
          %s901 = smul.u32 2, %s22
          %s903 = ssub.s32 1024, 1024
          %904 = vsyncadd %s894, %s903
          %s905 = smul.addr %s21, 8
          %s906 = sadd.s32 %s901, %s905
          %s907 = smul.addr %s906, 128
          %s908 = scalar_lea.hbm %s3, %s907
          %s909 = sshll.u32 %s897, 4
          %s910 = int_to_ptr.vmem [resolvable:$true] %s909
          %915 = dma.vmem_to_hbm [thread:$0]  %s910, 1024, %s908, %s894, 256, 256, 16
        $region36: #{tpu_custom_call.1} parent=31 // pred_fallthru
          _
      $region32: #{tpu_custom_call.1} parent=5 // pred_fallthru
        _
      %p916 = scmp.le.s32.totalorder 2, %s12
      // Predicated region
      $region37: #{tpu_custom_call.1} parent=5 // pred_check
        %p917 = pneg %p916
      $region38: #{tpu_custom_call.1} parent=5 // pred_check_branch
        %919 = sbr.rel (%p917) target = $region40
      $region39: #{tpu_custom_call.1} parent=5 // pred_region
        %s920 = ssub.s32 %s12, 2
        // Predicated region
        $region41: #{tpu_custom_call.1} parent=39 // pred_check
          %p921 = pneg %p125
        $region42: #{tpu_custom_call.1} parent=39 // pred_check_branch
          %923 = sbr.rel (%p921) target = $region44
        $region43: #{tpu_custom_call.1} parent=39 // pred_region
          %s924 = sand.u32 %s110, 1
          %s925 = scalar_lea.sflag [#allocation3], %s924
          %s926 = sand.u32 %s110, 1
          %s927 = smul.addr %s926, 64
          %s928 = scalar_lea.vmem [#allocation2], %s927
          %929 = dma.done %s925, 1024
        $region44: #{tpu_custom_call.1} parent=39 // pred_fallthru
          _
      $region40: #{tpu_custom_call.1} parent=5 // pred_fallthru
        _
    $region6: #{tpu_custom_call.1} parent=1 // loop_footer
      %s16 = sadd.s32 1, %s12
    $region7: #{tpu_custom_call.1} parent=1 // loop_footer_branch
      %11 = sbr.rel target = $region3
    $region8: #{tpu_custom_call.1} parent=1 // loop_exit
      _
    %930 = vsyncpa [#allocation3], 1
    %s931 = scalar_lea.sflag [#allocation3], 1
    %932 = vsyncpa %s931, 1

</llo_original>
